<compile_context>
chip_gen: v6e
topology: v6e:2x2x1
jax: 0.10.0
libtpu: 0.0.40
codegen_flags: <defaults>
</compile_context>

<pallas_src>
import numpy as np
import jax
import jax.numpy as jnp
from jax.experimental import pallas as pl
from jax.experimental.pallas import tpu as pltpu

# ---- model / problem sizes (small, consistent with the module) ---------------
BSZ = 2          # Wo_mat is built with bsz=2 in the module, so bsz must be 2
T = 8            # sequence length (context_length)
D = 16           # mod_dim
KW = 3           # conv kernel_size
NHEAD = 4        # unused in the conv variant, kept for config consistency

COMPUTE_DTYPE = jnp.bfloat16   # MXU operand dtype (f32 accumulation)


def _build_wo(rows: int, cols: int) -> jnp.ndarray:
    """Replicates torch.zeros(rows, cols).fill_diagonal_(1, wrap=True)."""
    wo = np.zeros((rows, cols), np.float32)
    k = 0
    while True:
        r = k + k // cols          # flat index k*(cols+1), row-major
        c = k % cols
        if r >= rows:
            break
        wo[r, c] = 1.0
        k += 1
    return jnp.asarray(wo)


def _build_folded_weight(w_attn, wo) -> jnp.ndarray:
    """Host-side, one-time fold of attn_lin weight + causal shifts + wo into a
    block-Toeplitz (T*D, T*D) matrix.  Exact: wo only selects/permutes columns
    of W_i^T, and the shift structure is encoded by block placement."""
    w = np.asarray(w_attn, np.float32)      # (KW*D, D), PyTorch layout: y = x @ w^T
    won = np.asarray(wo, np.float32)        # (KW*D, D)
    big = np.zeros((T * D, T * D), np.float32)
    for i in range(KW):
        blk = w[i * D:(i + 1) * D, :].T @ won[i * D:(i + 1) * D, :]   # x @ W_i^T @ wo_i
        for t in range(i, T):
            u = t - i
            big[u * D:(u + 1) * D, t * D:(t + 1) * D] = blk
    return jnp.asarray(big, dtype=COMPUTE_DTYPE)


# ---- Pallas kernel ------------------------------------------------------------
def _causal_conv_attn_kernel(x_ref, w_ref, o_ref):
    # x_ref: (BSZ, T*D)      f32  (cast to bf16 here, hidden under the input DMA)
    # w_ref: (T*D, T*D)      bf16 (pre-folded block-Toeplitz weight)
    # o_ref: (BSZ, T*D)      f32  (lane-dense, unmasked store)
    x = x_ref[...].astype(COMPUTE_DTYPE)
    o_ref[...] = jnp.dot(x, w_ref[...], preferred_element_type=jnp.float32)


def _causal_conv_self_attention_impl(x, big_w):
    """
    x:      (BSZ, T, D)      float32
    big_w:  (T*D, T*D)       bf16, pre-folded weight (built once, outside jit path)
    returns (BSZ, T, D)      float32
    """
    x_flat = x.reshape(BSZ, T * D)           # contiguous view, free

    out_flat = pl.pallas_call(
        _causal_conv_attn_kernel,
        out_shape=jax.ShapeDtypeStruct((BSZ, T * D), jnp.float32),
        in_specs=[
            pl.BlockSpec(memory_space=pltpu.MemorySpace.VMEM),
            pl.BlockSpec(memory_space=pltpu.MemorySpace.VMEM),
        ],
        out_specs=pl.BlockSpec(memory_space=pltpu.MemorySpace.VMEM),
    )(x_flat, big_w)

    return out_flat.reshape(BSZ, T, D)


causal_conv_self_attention = jax.jit(_causal_conv_self_attention_impl)


# ---- pure-JAX fp32 reference (mirrors the PyTorch forward step by step) -------
def _reference(x, w_attn, wo):
    hp = jax.lax.Precision.HIGHEST
    bsz, t, d = x.shape
    v = jnp.einsum("btd,ed->bte", x, w_attn, precision=hp)         # (bsz, T, KW*D)
    v = v.reshape(bsz, t, KW, d).transpose(0, 2, 1, 3)             # (bsz, KW, T, D)
    att = jnp.stack([jnp.eye(t, k=-i, dtype=jnp.float32) for i in range(KW)])
    z = jnp.einsum("ktu,bkud->bktd", att, v, precision=hp)         # (bsz, KW, T, D)
    z = z.transpose(0, 2, 1, 3).reshape(bsz, t, KW * d)            # (bsz, T, KW*D)
    return jnp.einsum("bte,ed->btd", z, wo, precision=hp)          # (bsz, T, D)


if __name__ == "__main__":
    key = jax.random.PRNGKey(0)
    kx, kw = jax.random.split(key)

    x = jax.random.normal(kx, (BSZ, T, D), dtype=jnp.float32)
    # attn_lin: nn.Linear(mod_dim, kW*mod_dim, bias=None) -> weight (kW*D, D), no bias
    w_attn = jax.random.normal(kw, (KW * D, D), dtype=jnp.float32) * (1.0 / np.sqrt(D))
    # Wo_mat(config.mod_dim, bsz=2, kW): identical per batch, so one matrix suffices
    wo = _build_wo(KW * D, D)

    # One-time host-side weight fold (hoisted out of the per-call jitted path).
    big_w = _build_folded_weight(w_attn, wo)

    out = causal_conv_self_attention(x, big_w)
    out = jax.block_until_ready(out)

    ref = _reference(x, w_attn, wo)
    # Kernel runs the matmul with bf16 operands (f32 accumulation), so compare
    # against the exact fp32 reference at bf16-level tolerance.
    np.testing.assert_allclose(np.asarray(out), np.asarray(ref), rtol=2e-2, atol=5e-2)

    # TODO(synk): out_dropout is modeled as identity (eval mode / dropout p=0).
    print("KERNEL_OK")
</pallas_src>

<mosaic_0001>
module attributes {stable_mosaic.version = 11 : i64} {
  func.func @_causal_conv_attn_kernel(%arg0: memref<2x128xf32, #tpu.memory_space<vmem>>, %arg1: memref<128x128xbf16, #tpu.memory_space<vmem>>, %arg2: memref<2x128xf32, #tpu.memory_space<vmem>>) attributes {dimension_semantics = [], scalar_prefetch = 0 : i64, scratch_operands = 0 : i64, tpu.core_type = #tpu.core_type<tc>} {
    %c0 = arith.constant 0 : index
    %c0_0 = arith.constant 0 : index
    %0 = vector.load %arg0[%c0, %c0_0] : memref<2x128xf32, #tpu.memory_space<vmem>>, vector<2x128xf32>
    %1 = arith.truncf %0 : vector<2x128xf32> to vector<2x128xbf16>
    %c0_1 = arith.constant 0 : index
    %c0_2 = arith.constant 0 : index
    %2 = vector.load %arg1[%c0_1, %c0_2] : memref<128x128xbf16, #tpu.memory_space<vmem>>, vector<128x128xbf16>
    %cst = arith.constant dense<0.000000e+00> : vector<2x128xf32>
    %3 = tpu.matmul %1, %2, %cst {dimension_numbers = #tpu.dot_dimension_numbers<[1], [0], [0], [1], [0, 0, 1, 1], [], []>} : vector<2x128xbf16>, vector<128x128xbf16>, vector<2x128xf32> -> vector<2x128xf32>
    %c0_3 = arith.constant 0 : index
    %c0_4 = arith.constant 0 : index
    %4 = vector.load %arg2[%c0_3, %c0_4] : memref<2x128xf32, #tpu.memory_space<vmem>>, vector<2x128xf32>
    tpu.vector_store %arg2[%c0_3, %c0_4], %3 {strides = array<i32>} : memref<2x128xf32, #tpu.memory_space<vmem>>, vector<2x128xf32>,
    return
  }
}

</mosaic_0001>

<llo_original>
// kernel: _causal_conv_self_attention_impl.1
$region0: #{_causal_conv_self_attention_impl.1}
  #allocation0 [shape = 'u32[]', space=smem, size = 0x4, offset = 0x4, fixed_abs, tag = 'smem constant byte address 0x4 - core index']
  #allocation1 [shape = 'u32[144,128]{1,0:T(1,128)}', space=vmem, size = 0x12000, scoped, tag = 'internal scratch']
  %s0 = inlined_call_operand.vmem [shape: f32[2,128], index: 0, kind: input, shape index: {}]
  %s1 = inlined_call_operand.hbm [shape: bf16[128,128], index: 1, kind: input, shape index: {}]
  %s2 = inlined_call_operand.vmem [shape: f32[2,128], index: 2, kind: output, shape index: {}]
  %s3 = sld [smem:[#allocation0]]
  $region22: #{_causal_conv_self_attention_impl.1} parent=0
    _
  %s5 = ssub.s32 1, %s3
  %s6 = scalar_select 0, %s5, %s3
  $region1: #{_causal_conv_self_attention_impl.1} parent=0
    #allocation2 [shape = 'u8[32768]{0}', space=vmem, size = 0x8000, scoped, tag = 'input window, operand 1, single buffered']
    #allocation3 [shape = 's32[1]{0}', space=sflag, size = 0x4, scoped, tag = 'scoped memory for _causal_conv_self_attention_impl.1']
    %7 = vsyncpa [#allocation3], 0
    // Predicated region
    $region2: #{_causal_conv_self_attention_impl.1} parent=1 // pred_check
      _
    $region3: #{_causal_conv_self_attention_impl.1} parent=1 // pred_check_branch
      %9 = sbr.rel (0) target = $region5
    $region4: #{_causal_conv_self_attention_impl.1} parent=1 // pred_region
      _
    $region5: #{_causal_conv_self_attention_impl.1} parent=1 // pred_fallthru
      _
    // Predicated region
    $region6: #{_causal_conv_self_attention_impl.1} parent=1 // pred_check
      _
    $region7: #{_causal_conv_self_attention_impl.1} parent=1 // pred_check_branch
      %11 = sbr.rel (0) target = $region9
    $region8: #{_causal_conv_self_attention_impl.1} parent=1 // pred_region
      %s13 = ssub.s32 1024, 1024
      %14 = vsyncadd [#allocation3], %s13
      %s15 = sshll.u32 [#allocation2], 4
      %s16 = int_to_ptr.vmem [resolvable:$true] %s15
      %21 = dma.hbm_to_vmem [thread:$0]  %s1, 1024, %s16, [#allocation3], 64, 64, 4
    $region9: #{_causal_conv_self_attention_impl.1} parent=1 // pred_fallthru
      _
    // Predicated region
    $region10: #{_causal_conv_self_attention_impl.1} parent=1 // pred_check
      _
    $region11: #{_causal_conv_self_attention_impl.1} parent=1 // pred_check_branch
      %23 = sbr.rel (0) target = $region13
    $region12: #{_causal_conv_self_attention_impl.1} parent=1 // pred_region
      %24 = dma.done [#allocation3], 1024
    $region13: #{_causal_conv_self_attention_impl.1} parent=1 // pred_fallthru
      _
    %v26 = vld [vmem:[%s0] sm:$0x3]
    %v27 = vpack.c.bf16 %v26, %v26
    %v28 = vld [vmem:[#allocation2] sm:$0xf]
    %v29 = vld [vmem:[#allocation2 + $0x4] sm:$0xf]
    %v30 = vld [vmem:[#allocation2 + $0x8] sm:$0xf]
    %v31 = vld [vmem:[#allocation2 + $0xc] sm:$0xf]
    %v32 = vld [vmem:[#allocation2 + $0x10] sm:$0xf]
    %v33 = vld [vmem:[#allocation2 + $0x14] sm:$0xf]
    %v34 = vld [vmem:[#allocation2 + $0x18] sm:$0xf]
    %v35 = vld [vmem:[#allocation2 + $0x1c] sm:$0xf]
    %v36 = vld [vmem:[#allocation2 + $0x20] sm:$0xf]
    %v37 = vld [vmem:[#allocation2 + $0x24] sm:$0xf]
    %v38 = vld [vmem:[#allocation2 + $0x28] sm:$0xf]
    %v39 = vld [vmem:[#allocation2 + $0x2c] sm:$0xf]
    %v40 = vld [vmem:[#allocation2 + $0x30] sm:$0xf]
    %v41 = vld [vmem:[#allocation2 + $0x34] sm:$0xf]
    %v42 = vld [vmem:[#allocation2 + $0x38] sm:$0xf]
    %v43 = vld [vmem:[#allocation2 + $0x3c] sm:$0xf]
    %v60 = vunpack.c.l.b16 %v28
    %v61 = vunpack.c.l.b16 %v29
    %v62 = vunpack.c.l.b16 %v30
    %v63 = vunpack.c.l.b16 %v31
    %v64 = vunpack.c.l.b16 %v32
    %v65 = vunpack.c.l.b16 %v33
    %v66 = vunpack.c.l.b16 %v34
    %v67 = vunpack.c.l.b16 %v35
    %v68 = vunpack.c.l.b16 %v36
    %v69 = vunpack.c.l.b16 %v37
    %v70 = vunpack.c.l.b16 %v38
    %v71 = vunpack.c.l.b16 %v39
    %v72 = vunpack.c.l.b16 %v40
    %v73 = vunpack.c.l.b16 %v41
    %v74 = vunpack.c.l.b16 %v42
    %v75 = vunpack.c.l.b16 %v43
    %v76 = vpack.c.b16 %v61, %v60
    %v77 = vpack.c.b16 %v63, %v62
    %v78 = vpack.c.b16 %v65, %v64
    %v79 = vpack.c.b16 %v67, %v66
    %v80 = vpack.c.b16 %v69, %v68
    %v81 = vpack.c.b16 %v71, %v70
    %v82 = vpack.c.b16 %v73, %v72
    %v83 = vpack.c.b16 %v75, %v74
    %92 = vmatprep.subr.bf16.mxu0 0
    %93 = vmatpush1.bf16.msra.mxu0 %v83
    %94 = vmatprep.subr.bf16.mxu0 0
    %95 = vmatpush1.bf16.msra.mxu0 %v82
    %96 = vmatprep.subr.bf16.mxu0 0
    %97 = vmatpush1.bf16.msra.mxu0 %v81
    %98 = vmatprep.subr.bf16.mxu0 0
    %99 = vmatpush1.bf16.msra.mxu0 %v80
    %100 = vmatprep.subr.bf16.mxu0 0
    %101 = vmatpush1.bf16.msra.mxu0 %v79
    %102 = vmatprep.subr.bf16.mxu0 0
    %103 = vmatpush1.bf16.msra.mxu0 %v78
    %104 = vmatprep.subr.bf16.mxu0 0
    %105 = vmatpush1.bf16.msra.mxu0 %v77
    %106 = vmatprep.subr.bf16.mxu0 0
    %107 = vmatpush1.bf16.msra.mxu0 %v76
    %108 = vmatprep.subr.bf16.mxu0 0
    %109 = vmatpush2.bf16.msra.mxu0 0
    %110 = vmatprep.subr.bf16.mxu0 0
    %111 = vmatpush2.bf16.msra.mxu0 0
    %112 = vmatprep.subr.bf16.mxu0 0
    %113 = vmatpush2.bf16.msra.mxu0 0
    %114 = vmatprep.subr.bf16.mxu0 0
    %115 = vmatpush2.bf16.msra.mxu0 0
    %116 = vmatprep.subr.bf16.mxu0 0
    %117 = vmatpush2.bf16.msra.mxu0 0
    %118 = vmatprep.subr.bf16.mxu0 0
    %119 = vmatpush2.bf16.msra.mxu0 0
    %120 = vmatprep.subr.bf16.mxu0 0
    %121 = vmatpush2.bf16.msra.mxu0 0
    %122 = vmatprep.subr.bf16.mxu0 0
    %123 = vmatpush2.bf16.msra.mxu0 0
    %124 = vmatprep.mubr.bf16.mxu0 0
    %125 = vmatmul.mubr.bf16.gmra.mxu0 %v27
    %v126 = vpop.f32.mrf.mxu0
    %v127 = vadd.f32 0.0, %v126
    %v128 = vpop.f32.mrf.mxu0
    %v129 = vpop.f32.mrf.mxu0
    %v130 = vpop.f32.mrf.mxu0
    %131 = vdwg.mxu0
    %132 = vst [vmem:[%s2] sm:$0x3] %v127
    // Predicated region
    $region14: #{_causal_conv_self_attention_impl.1} parent=1 // pred_check
      _
    $region15: #{_causal_conv_self_attention_impl.1} parent=1 // pred_check_branch
      %134 = sbr.rel (0) target = $region17
    $region16: #{_causal_conv_self_attention_impl.1} parent=1 // pred_region
      _
    $region17: #{_causal_conv_self_attention_impl.1} parent=1 // pred_fallthru
      _
    // Predicated region
    $region18: #{_causal_conv_self_attention_impl.1} parent=1 // pred_check
      _
    $region19: #{_causal_conv_self_attention_impl.1} parent=1 // pred_check_branch
      %136 = sbr.rel (0) target = $region21
    $region20: #{_causal_conv_self_attention_impl.1} parent=1 // pred_region
      _
    $region21: #{_causal_conv_self_attention_impl.1} parent=1 // pred_fallthru
      _
    %137 = vsyncpa [#allocation3], 1

</llo_original>
